<compile_context>
chip_gen: v7x
topology: tpu7x:2x2x1
jax: 0.10.0
libtpu: 0.0.40
codegen_flags: <defaults>
</compile_context>

<pallas_src>
import jax
import jax.numpy as jnp
from jax.experimental import pallas as pl
from jax.experimental.pallas import tpu as pltpu

NUM_PARTICLES = 10
_LANE = 128


def _round_up(n, m):
    return ((n + m - 1) // m) * m


# ---------------------------------------------------------------------------
# Fused reparameterized-Normal sampling kernel (gridless, whole slab in VMEM)
#   out[p, l] = mu[0, l] + exp(log_sigma[0, l]) * eps[p, l]
# ---------------------------------------------------------------------------
def _fused_reparam_kernel(mu_ref, ls_ref, eps_ref, out_ref):
    sigma = jnp.exp(ls_ref[...])                         # (1, Lp): EUP pass done once, not per particle
    out_ref[...] = mu_ref[...] + sigma * eps_ref[...]    # (1, Lp) broadcasts over (P, Lp)


def fused_reparam_sample(mu_flat, ls_flat, eps_flat):
    """mu_flat, ls_flat: [1, Lp]; eps_flat: [P, Lp]  ->  samples [P, Lp]."""
    P, Lp = eps_flat.shape
    assert mu_flat.shape == (1, Lp) and ls_flat.shape == (1, Lp)
    assert Lp % _LANE == 0
    return pl.pallas_call(
        _fused_reparam_kernel,
        out_shape=jax.ShapeDtypeStruct((P, Lp), mu_flat.dtype),
        in_specs=[pl.BlockSpec(memory_space=pltpu.MemorySpace.VMEM)] * 3,
        out_specs=pl.BlockSpec(memory_space=pltpu.MemorySpace.VMEM),
    )(mu_flat, ls_flat, eps_flat)


# ---------------------------------------------------------------------------
# TFAGuidePrior forward (layout plumbing in plain JAX, sampling in the kernel)
# ---------------------------------------------------------------------------
def tfa_guide_prior_forward(params, noise, times=None,
                            num_particles=NUM_PARTICLES, block=0):
    """params: dict of {'weights','factor_centers','factor_log_widths'},
               each with 'mu' and 'log_sigma'.
       noise : dict of pre-drawn standard-normal eps tensors, one per group,
               already shaped [num_particles, ...].
       times : static Python tuple (t0, t1) selecting the weight time window."""
    if times is None:
        times = (0, params['weights']['mu'].shape[0])

    # --- slice the weight params over the requested time window (glue) ---
    w_mu = params['weights']['mu'][times[0]:times[1], :]          # [T, K]
    w_ls = params['weights']['log_sigma'][times[0]:times[1], :]
    c_mu = params['factor_centers']['mu']                          # [K, 3]
    c_ls = params['factor_centers']['log_sigma']
    lw_mu = params['factor_log_widths']['mu']                      # [K]
    lw_ls = params['factor_log_widths']['log_sigma']

    P = num_particles
    T, K = w_mu.shape
    n_w, n_c, n_lw = T * K, c_mu.size, lw_mu.size
    L = n_w + n_c + n_lw
    Lp = _round_up(L, _LANE)
    pad = Lp - L

    # --- flatten + concat all groups into one lane-dense slab ---
    mu_flat = jnp.concatenate(
        [w_mu.reshape(-1), c_mu.reshape(-1), lw_mu.reshape(-1)])
    ls_flat = jnp.concatenate(
        [w_ls.reshape(-1), c_ls.reshape(-1), lw_ls.reshape(-1)])
    eps_flat = jnp.concatenate(
        [noise['weights'].reshape(P, -1),
         noise['factor_centers'].reshape(P, -1),
         noise['factor_log_widths'].reshape(P, -1)], axis=1)

    # pad with zeros: exp(0) * 0 + 0 = 0, so the pad region is inert
    mu_flat = jnp.pad(mu_flat, (0, pad)).reshape(1, Lp)
    ls_flat = jnp.pad(ls_flat, (0, pad)).reshape(1, Lp)
    eps_flat = jnp.pad(eps_flat, ((0, 0), (0, pad)))

    # --- single fused kernel launch ---
    samples = fused_reparam_sample(mu_flat, ls_flat, eps_flat)     # [P, Lp]

    # --- unpack back into the three named groups ---
    weights = samples[:, :n_w].reshape(P, T, K)              # Weights%d t%d-%d
    centers = samples[:, n_w:n_w + n_c].reshape(P, K, 3)     # FactorCenters%d
    log_widths = samples[:, n_w + n_c:L].reshape(P, K)       # FactorLogWidths%d

    # TODO(synk): probtorch trace bookkeeping (variable naming / log-prob
    # registration) has no Pallas equivalent; only the sampled values are produced.
    return weights, centers, log_widths


# ---------------------------------------------------------------------------
# Self-test
# ---------------------------------------------------------------------------
if __name__ == "__main__":
    key = jax.random.PRNGKey(0)
    num_times, num_factors = 16, 32
    times = (2, 10)                       # -> T_window = 8
    P = NUM_PARTICLES

    ks = jax.random.split(key, 9)

    # Deterministic synthetic variational parameters (shapes implied by the
    # module: weights [T, K], factor_centers [K, 3], factor_log_widths [K]).
    params = {
        'weights': {
            'mu':        jax.random.normal(ks[0], (num_times, num_factors), jnp.float32),
            'log_sigma': jax.random.normal(ks[1], (num_times, num_factors), jnp.float32) * 0.1 - 1.0,
        },
        'factor_centers': {
            'mu':        jax.random.normal(ks[2], (num_factors, 3), jnp.float32),
            'log_sigma': jax.random.normal(ks[3], (num_factors, 3), jnp.float32) * 0.1 - 1.0,
        },
        'factor_log_widths': {
            'mu':        jax.random.normal(ks[4], (num_factors,), jnp.float32),
            'log_sigma': jax.random.normal(ks[5], (num_factors,), jnp.float32) * 0.1 - 1.0,
        },
    }

    t_window = times[1] - times[0]
    noise = {
        'weights':           jax.random.normal(ks[6], (P, t_window, num_factors), jnp.float32),
        'factor_centers':    jax.random.normal(ks[7], (P, num_factors, 3), jnp.float32),
        'factor_log_widths': jax.random.normal(ks[8], (P, num_factors), jnp.float32),
    }

    weights, centers, log_widths = tfa_guide_prior_forward(
        params, noise, times=times, num_particles=P, block=0)
    jax.block_until_ready((weights, centers, log_widths))

    # Reference check (plain JAX) of the reparameterized sampling math.
    ref_w = params['weights']['mu'][times[0]:times[1]][None] + \
        jnp.exp(params['weights']['log_sigma'][times[0]:times[1]])[None] * noise['weights']
    ref_c = params['factor_centers']['mu'][None] + \
        jnp.exp(params['factor_centers']['log_sigma'])[None] * noise['factor_centers']
    ref_lw = params['factor_log_widths']['mu'][None] + \
        jnp.exp(params['factor_log_widths']['log_sigma'])[None] * noise['factor_log_widths']

    assert weights.shape == (P, t_window, num_factors)
    assert centers.shape == (P, num_factors, 3)
    assert log_widths.shape == (P, num_factors)
    assert jnp.allclose(weights, ref_w, atol=1e-5)
    assert jnp.allclose(centers, ref_c, atol=1e-5)
    assert jnp.allclose(log_widths, ref_lw, atol=1e-5)

    print("KERNEL_OK")
</pallas_src>

<mosaic_0001>
module attributes {stable_mosaic.version = 11 : i64} {
  func.func @_fused_reparam_kernel(%arg0: memref<1x384xf32, #tpu.memory_space<vmem>>, %arg1: memref<1x384xf32, #tpu.memory_space<vmem>>, %arg2: memref<10x384xf32, #tpu.memory_space<vmem>>, %arg3: memref<10x384xf32, #tpu.memory_space<vmem>>) attributes {dimension_semantics = [], scalar_prefetch = 0 : i64, scratch_operands = 0 : i64, tpu.core_type = #tpu.core_type<tc>} {
    %c0 = arith.constant 0 : index
    %c0_0 = arith.constant 0 : index
    %0 = vector.load %arg1[%c0, %c0_0] : memref<1x384xf32, #tpu.memory_space<vmem>>, vector<1x384xf32>
    %1 = math.exp %0 : vector<1x384xf32>
    %c0_1 = arith.constant 0 : index
    %c0_2 = arith.constant 0 : index
    %2 = vector.load %arg0[%c0_1, %c0_2] : memref<1x384xf32, #tpu.memory_space<vmem>>, vector<1x384xf32>
    %c0_3 = arith.constant 0 : index
    %c0_4 = arith.constant 0 : index
    %3 = vector.load %arg2[%c0_3, %c0_4] : memref<10x384xf32, #tpu.memory_space<vmem>>, vector<10x384xf32>
    %4 = vector.broadcast %1 : vector<1x384xf32> to vector<10x384xf32>
    %5 = arith.mulf %4, %3 : vector<10x384xf32>
    %6 = vector.broadcast %2 : vector<1x384xf32> to vector<10x384xf32>
    %7 = arith.addf %6, %5 : vector<10x384xf32>
    %c0_5 = arith.constant 0 : index
    %c0_6 = arith.constant 0 : index
    %8 = vector.load %arg3[%c0_5, %c0_6] : memref<10x384xf32, #tpu.memory_space<vmem>>, vector<10x384xf32>
    tpu.vector_store %arg3[%c0_5, %c0_6], %7 {strides = array<i32>} : memref<10x384xf32, #tpu.memory_space<vmem>>, vector<10x384xf32>,
    return
  }
}

</mosaic_0001>

<llo_original>
// kernel: tpu_custom_call.1
$region0: #{tpu_custom_call.1}
  #allocation0 [shape = 'u32[]', space=smem, size = 0x4, offset = 0x4, fixed_abs, tag = 'smem constant byte address 0x4 - core index']
  #allocation1 [shape = 'u32[144,128]{1,0:T(1,128)}', space=vmem, size = 0x12000, scoped, tag = 'internal scratch']
  %s0 = inlined_call_operand.hbm [shape: f32[1,384], index: 0, kind: input, shape index: {}]
  %s1 = inlined_call_operand.vmem [shape: f32[1,384], index: 1, kind: input, shape index: {}]
  %s2 = inlined_call_operand.hbm [shape: f32[10,384], index: 2, kind: input, shape index: {}]
  %s3 = inlined_call_operand.hbm [shape: f32[10,384], index: 3, kind: output, shape index: {}]
  %s4 = sld [smem:[#allocation0]]
  $region30: #{tpu_custom_call.1} parent=0
    _
  %s6 = ssub.s32 1, %s4
  %s7 = scalar_select 0, %s6, %s4
  $region1: #{tpu_custom_call.1} parent=0
    #allocation2 [shape = 'u8[1536]{0}', space=vmem, size = 0x800, scoped, tag = 'input window, operand 0, single buffered']
    #allocation3 [shape = 's32[1]{0}', space=sflag, size = 0x4, scoped, tag = 'scoped memory for tpu_custom_call.1']
    #allocation4 [shape = 's32[1]{0}', space=sflag, size = 0x4, scoped, tag = 'scoped memory for tpu_custom_call.1']
    #allocation5 [shape = 'u8[24576]{0}', space=vmem, size = 0x6000, scoped, tag = 'input window, operand 2, single buffered']
    #allocation6 [shape = 's32[1]{0}', space=sflag, size = 0x4, scoped, tag = 'scoped memory for tpu_custom_call.1']
    #allocation7 [shape = 'u8[24576]{0}', space=vmem, size = 0x6000, scoped, tag = 'output window, operand 0, single buffered']
    %8 = vsyncpa [#allocation3], 0
    %9 = vsyncpa [#allocation6], 0
    %10 = vsyncpa [#allocation4], 0
    // Predicated region
    $region2: #{tpu_custom_call.1} parent=1 // pred_check
      _
    $region3: #{tpu_custom_call.1} parent=1 // pred_check_branch
      %12 = sbr.rel (0) target = $region5
    $region4: #{tpu_custom_call.1} parent=1 // pred_region
      %s14 = ssub.s32 48, 48
      %15 = vsyncadd [#allocation3], %s14
      %s17 = sshll.u32 [#allocation2], 4
      %s18 = int_to_ptr.vmem [resolvable:$true] %s17
      %20 = dma.hbm_to_vmem [thread:$0]  %s0, 48, %s18, [#allocation3]
    $region5: #{tpu_custom_call.1} parent=1 // pred_fallthru
      _
    // Predicated region
    $region6: #{tpu_custom_call.1} parent=1 // pred_check
      _
    $region7: #{tpu_custom_call.1} parent=1 // pred_check_branch
      %22 = sbr.rel (0) target = $region9
    $region8: #{tpu_custom_call.1} parent=1 // pred_region
      _
    $region9: #{tpu_custom_call.1} parent=1 // pred_fallthru
      _
    // Predicated region
    $region10: #{tpu_custom_call.1} parent=1 // pred_check
      _
    $region11: #{tpu_custom_call.1} parent=1 // pred_check_branch
      %24 = sbr.rel (0) target = $region13
    $region12: #{tpu_custom_call.1} parent=1 // pred_region
      %s26 = ssub.s32 768, 768
      %27 = vsyncadd [#allocation6], %s26
      %s28 = sshll.u32 [#allocation5], 4
      %s29 = int_to_ptr.vmem [resolvable:$true] %s28
      %34 = dma.hbm_to_vmem [thread:$0]  %s2, 768, %s29, [#allocation6], 384, 384, 24
    $region13: #{tpu_custom_call.1} parent=1 // pred_fallthru
      _
    // Predicated region
    $region14: #{tpu_custom_call.1} parent=1 // pred_check
      _
    $region15: #{tpu_custom_call.1} parent=1 // pred_check_branch
      %36 = sbr.rel (0) target = $region17
    $region16: #{tpu_custom_call.1} parent=1 // pred_region
      %37 = dma.done [#allocation3], 48
    $region17: #{tpu_custom_call.1} parent=1 // pred_fallthru
      _
    // Predicated region
    $region18: #{tpu_custom_call.1} parent=1 // pred_check
      _
    $region19: #{tpu_custom_call.1} parent=1 // pred_check_branch
      %39 = sbr.rel (0) target = $region21
    $region20: #{tpu_custom_call.1} parent=1 // pred_region
      %40 = dma.done [#allocation6], 768
    $region21: #{tpu_custom_call.1} parent=1 // pred_fallthru
      _
    %v41 = vld [vmem:[%s1] sm:$0x7]
    %v42 = vmul.f32 %v41, 1.442695
    %v43 = vpow.pop %v42
    %v44 = vld [vmem:[#allocation2] sm:$0x7]
    %v45 = vld [vmem:[#allocation5] sm:$0xff]
    %v46 = vld [vmem:[#allocation5 + $0x8] sm:$0xff]
    %v47 = vld [vmem:[#allocation5 + $0x10] sm:$0xff]
    %v48 = vld [vmem:[#allocation5 + $0x18] sm:$0x3]
    %v49 = vld [vmem:[#allocation5 + $0x20] sm:$0x3]
    %v50 = vld [vmem:[#allocation5 + $0x28] sm:$0x3]
    %v52 = vlaneseq
    %v53 = vshrl.u32 %v52, 7
    %v54 = vsub.s32 0, %v53
    %v55 = vrot.slane %v43, %v54
    %v56 = vlaneseq
    %v57 = vshrl.u32 %v56, 7
    %v58 = vsub.s32 1, %v57
    %v59 = vrot.slane %v43, %v58
    %v60 = vlaneseq
    %v61 = vshrl.u32 %v60, 7
    %v62 = vsub.s32 2, %v61
    %v63 = vrot.slane %v43, %v62
    %v67 = vmul.f32 %v55, %v45
    %v68 = vmul.f32 %v59, %v46
    %v69 = vmul.f32 %v63, %v47
    %v70 = vmul.f32 %v55, %v48
    %v71 = vmul.f32 %v59, %v49
    %v72 = vmul.f32 %v63, %v50
    %v74 = vlaneseq
    %v75 = vshrl.u32 %v74, 7
    %v76 = vsub.s32 0, %v75
    %v77 = vrot.slane %v44, %v76
    %v78 = vlaneseq
    %v79 = vshrl.u32 %v78, 7
    %v80 = vsub.s32 1, %v79
    %v81 = vrot.slane %v44, %v80
    %v82 = vlaneseq
    %v83 = vshrl.u32 %v82, 7
    %v84 = vsub.s32 2, %v83
    %v85 = vrot.slane %v44, %v84
    %v89 = vadd.f32 %v77, %v67
    %v90 = vadd.f32 %v81, %v68
    %v91 = vadd.f32 %v85, %v69
    %v92 = vadd.f32 %v77, %v70
    %v93 = vadd.f32 %v81, %v71
    %v94 = vadd.f32 %v85, %v72
    %95 = vst [vmem:[#allocation7] sm:$0xff] %v89
    %96 = vst [vmem:[#allocation7 + $0x8] sm:$0xff] %v90
    %97 = vst [vmem:[#allocation7 + $0x10] sm:$0xff] %v91
    %98 = vst [vmem:[#allocation7 + $0x18] sm:$0x3] %v92
    %99 = vst [vmem:[#allocation7 + $0x20] sm:$0x3] %v93
    %100 = vst [vmem:[#allocation7 + $0x28] sm:$0x3] %v94
    // Predicated region
    $region22: #{tpu_custom_call.1} parent=1 // pred_check
      _
    $region23: #{tpu_custom_call.1} parent=1 // pred_check_branch
      %102 = sbr.rel (0) target = $region25
    $region24: #{tpu_custom_call.1} parent=1 // pred_region
      %s104 = ssub.s32 768, 768
      %105 = vsyncadd [#allocation4], %s104
      %s106 = sshll.u32 [#allocation7], 4
      %s107 = int_to_ptr.vmem [resolvable:$true] %s106
      %112 = dma.vmem_to_hbm [thread:$0]  %s107, 768, %s3, [#allocation4], 384, 384, 24
    $region25: #{tpu_custom_call.1} parent=1 // pred_fallthru
      _
    // Predicated region
    $region26: #{tpu_custom_call.1} parent=1 // pred_check
      _
    $region27: #{tpu_custom_call.1} parent=1 // pred_check_branch
      %114 = sbr.rel (0) target = $region29
    $region28: #{tpu_custom_call.1} parent=1 // pred_region
      %115 = dma.done [#allocation4], 768
    $region29: #{tpu_custom_call.1} parent=1 // pred_fallthru
      _
    %116 = vsyncpa [#allocation3], 1
    %117 = vsyncpa [#allocation6], 1
    %118 = vsyncpa [#allocation4], 1

</llo_original>
